<compile_context>
chip_gen: v6e
topology: v6e:2x2x1
jax: 0.10.0
libtpu: 0.0.40
codegen_flags: <defaults>
</compile_context>

<pallas_src>
import functools

import jax
import jax.numpy as jnp
from jax import lax
from jax.experimental import pallas as pl
from jax.experimental.pallas import tpu as pltpu

_NEG_BIG = -1e30
_LANE = 128
_SUBLANE = 8


def _round_up(x, m):
    return (x + m - 1) // m * m


def _abcf_kernel(idx_ref, emb_hbm, anch_ref, vect_ref, exc_ref, colsum_ref,
                 buf, sem, *, n_anchors, n_rows, tb):
    i = pl.program_id(0)
    base = i * tb

    # ---- Fused embedding gather: one row DMA per (scattered) index. ----------
    # Indices live in SMEM (scalar prefetch); the table stays in HBM.
    # TODO(synk): double-buffer the gather against the previous tile's compute
    # via an explicit per-core outer grid axis (kept single-buffered here so the
    # batch axis stays safely "parallel" for megacore sharding).
    @pl.loop(0, tb)
    def _(r):
        row = idx_ref[base + r]
        pltpu.make_async_copy(emb_hbm.at[row], buf.at[r], sem.at[0]).start()

    @pl.loop(0, tb)
    def _(r):
        # The descriptor only fixes the per-copy wait size; indices are dummies.
        pltpu.make_async_copy(emb_hbm.at[0], buf.at[0], sem.at[0]).wait()

    # ---- Compute -------------------------------------------------------------
    e = buf[...]                               # [TB, D_pad], storage dtype
    a = anch_ref[...]                          # [A_pad, D_pad], storage dtype
    if e.dtype != a.dtype:                     # trace-time branch
        ct = jnp.promote_types(e.dtype, a.dtype)
        e = e.astype(ct)
        a = a.astype(ct)

    # o_dots = e @ anchors.T : contract both operands on their last (lane) dim,
    # operands in native (bf16-capable) dtype, f32 accumulation on the MXU.
    dots = lax.dot_general(
        e, a, dimension_numbers=(((1,), (1,)), ((), ())),
        preferred_element_type=jnp.float32)    # [TB, A_pad]

    tb_, a_pad = dots.shape
    col_valid = lax.broadcasted_iota(jnp.int32, (tb_, a_pad), 1) < n_anchors
    dots = jnp.where(col_valid, dots, _NEG_BIG)  # mask padded anchor columns

    # softmax over the (padded) anchor dimension
    m = jnp.max(dots, axis=-1, keepdims=True)
    shifted = dots - m
    p = jnp.exp(shifted)
    denom = jnp.sum(p, axis=-1, keepdims=True)
    inv = pl.reciprocal(denom, approx=True)      # EUP slot
    inv = inv * (2.0 - denom * inv)              # one Newton step -> ~1e-6 rel err
    coeff = p * inv                              # [TB, A_pad], f32

    # o_vect = coeff @ anchors (padded anchor rows are zero -> no contribution).
    # coeff is cast to the anchor storage dtype so a bf16 model stays on the
    # bf16 MXU path; lane-padded D keeps this store unmasked (dense vst).
    vect = jnp.dot(coeff.astype(a.dtype), a, preferred_element_type=jnp.float32)
    vect_ref[...] = vect.astype(vect_ref.dtype)

    # log-coefficients straight from the shifted logits: one log per row and no
    # 0*log(0) NaN hazard on underflow.
    log_coeff = shifted - jnp.log(denom)

    # Mask rows that are only batch padding.
    row_valid = (lax.broadcasted_iota(jnp.int32, (tb_, 1), 0) + base) < n_rows
    valid = jnp.logical_and(row_valid, col_valid)

    ent = jnp.where(valid, coeff * log_coeff, 0.0)
    coeff_m = jnp.where(valid, coeff, 0.0)

    # Per-tile partial reductions (sublane sums only); only sublane 0 of the
    # output block is written. Cross-tile finalize + global q_k normalization
    # happen in the wrapper, so the batch grid axis stays "parallel".
    exc_ref[0:1, :] = -jnp.sum(ent, axis=0, keepdims=True)       # [1, A_pad]
    colsum_ref[0:1, :] = jnp.sum(coeff_m, axis=0, keepdims=True)  # [1, A_pad]


def abcf_forward(o_idxs, emb_table, anchors):
    """Forward pass of the anchor-based feature extractor.

    o_idxs:    int32 [B] or [B, n_neg_p_1]
    emb_table: [n_objects, D] (f32 or bf16)
    anchors:   [A, D]
    Returns (o_vect, exc, inc); o_vect has shape o_idxs.shape + (D,).
    """
    assert o_idxs.ndim in (1, 2), f"bad o_idxs shape {o_idxs.shape}"
    orig_shape = o_idxs.shape
    flat_idxs = o_idxs.reshape(-1).astype(jnp.int32)

    n_objects, D = emb_table.shape
    A, D_a = anchors.shape
    assert D == D_a
    out_dtype = emb_table.dtype
    B = flat_idxs.shape[0]

    # Lane-pad both feature (D) and anchor (A) axes to 128 for dense vregs,
    # dense DMAs and full MXU width.
    D_pad = _round_up(max(D, _LANE), _LANE)
    A_pad = _round_up(max(A, _LANE), _LANE)

    anchors_p = anchors
    if (A_pad, D_pad) != (A, D):
        anchors_p = jnp.zeros((A_pad, D_pad), anchors.dtype).at[:A, :D].set(anchors)
    emb_p = emb_table
    if D_pad != D:
        # TODO(synk): for very large tables with D % 128 != 0, keep the table
        # pre-padded outside the forward pass instead of re-padding per call.
        emb_p = jnp.zeros((n_objects, D_pad), emb_table.dtype).at[:, :D].set(emb_table)

    esize = jnp.dtype(emb_p.dtype).itemsize
    asize = jnp.dtype(anchors_p.dtype).itemsize
    osize = jnp.dtype(out_dtype).itemsize

    # VMEM budget from the actual chip (v5e/v6e: 128 MiB, v7x: 64 MiB per TC).
    try:
        vmem_cap = int(pltpu.get_tpu_info().vmem_capacity_bytes)
    except Exception:
        vmem_cap = 64 * 1024 * 1024
    vmem_limit = max(32 * 1024 * 1024, min(int(vmem_cap * 0.7), 100 * 1024 * 1024))

    # Fixed VMEM: double-buffered resident anchor block + slack for partial outs
    # and compiler scratch. Per-row: gather buffer + double-buffered vect output
    # + f32 vect intermediate + ~8 live [tb, A_pad] f32 temporaries.
    # TODO(synk): if the anchor slab alone approaches the limit (huge A*D), tile
    # the anchor axis with an online-softmax accumulation.
    anchor_bytes = 2 * A_pad * D_pad * asize
    fixed_bytes = anchor_bytes + (4 << 20)
    bytes_per_row = esize * D_pad + 2 * osize * D_pad + 4 * D_pad + 8 * 4 * A_pad
    avail = max(vmem_limit - fixed_bytes, 0)
    tb = max(_SUBLANE, min(512, avail // max(bytes_per_row, 1)))
    tb = (tb // _SUBLANE) * _SUBLANE
    # Keep grid >= 2 when possible so the ("parallel",) axis can use both
    # TensorCores on v7x.
    tb = min(tb, max(_SUBLANE, _round_up(-(-B // 2), _SUBLANE)))
    tb = min(tb, _round_up(B, _SUBLANE))
    b_pad = _round_up(B, tb)
    grid = b_pad // tb

    idx_p = flat_idxs
    if b_pad != B:
        idx_p = jnp.zeros((b_pad,), jnp.int32).at[:B].set(flat_idxs)

    kernel = functools.partial(_abcf_kernel, n_anchors=A, n_rows=B, tb=tb)

    cost = pl.CostEstimate(
        flops=4 * b_pad * A_pad * D_pad,
        transcendentals=b_pad * A_pad + 2 * b_pad,
        bytes_accessed=(b_pad * D_pad * esize + b_pad * D_pad * osize
                        + A_pad * D_pad * asize + 2 * grid * _SUBLANE * A_pad * 4),
    )

    vect, exc_part, colsum_part = pl.pallas_call(
        kernel,
        out_shape=(
            jax.ShapeDtypeStruct((b_pad, D_pad), out_dtype),
            jax.ShapeDtypeStruct((grid * _SUBLANE, A_pad), jnp.float32),
            jax.ShapeDtypeStruct((grid * _SUBLANE, A_pad), jnp.float32),
        ),
        grid_spec=pltpu.PrefetchScalarGridSpec(
            num_scalar_prefetch=1,
            grid=(grid,),
            in_specs=[
                pl.BlockSpec(memory_space=pl.ANY),                    # emb table in HBM
                pl.BlockSpec((A_pad, D_pad), lambda i, idx: (0, 0)),  # resident anchors
            ],
            out_specs=(
                pl.BlockSpec((tb, D_pad), lambda i, idx: (i, 0)),
                pl.BlockSpec((_SUBLANE, A_pad), lambda i, idx: (i, 0)),
                pl.BlockSpec((_SUBLANE, A_pad), lambda i, idx: (i, 0)),
            ),
            scratch_shapes=[
                pltpu.VMEM((tb, D_pad), emb_p.dtype),    # gathered embedding tile
                pltpu.SemaphoreType.DMA((1,)),
            ],
        ),
        compiler_params=pltpu.CompilerParams(
            dimension_semantics=("parallel",),
            vmem_limit_bytes=vmem_limit,
        ),
        cost_estimate=cost,
    )(idx_p, emb_p, anchors_p)

    # Finalize entropies from per-tile partials (only sublane 0 was written).
    # q_k must use GLOBAL column sums — per-tile q_k would be wrong.
    exc_rows = exc_part.reshape(grid, _SUBLANE, A_pad)[:, 0, :A]
    col_rows = colsum_part.reshape(grid, _SUBLANE, A_pad)[:, 0, :A]
    exc = jnp.sum(exc_rows)
    col_total = jnp.sum(col_rows, axis=0)                 # [A] global column sums
    q_k = col_total / jnp.sum(col_total)
    inc = -jnp.sum(q_k * jnp.log(q_k))

    o_vect = vect[:B, :D].reshape(*orig_shape, D)
    return o_vect, exc, inc


def _reference(o_idxs, emb_table, anchors):
    o_embed = emb_table[o_idxs]
    dots = o_embed @ anchors.T
    coeff = jax.nn.softmax(dots, axis=-1)
    o_vect = coeff @ anchors
    exc = -(coeff * jnp.log(coeff)).sum()
    q_k = coeff.reshape(-1, anchors.shape[0]).sum(axis=0) / coeff.sum()
    inc = -(q_k * jnp.log(q_k)).sum()
    return o_vect, exc, inc


if __name__ == "__main__":
    # Small shapes consistent with the module:
    #   n_objects=32 (embedding table rows), embedding_dim=32, n_anchors=8,
    #   o_idxs of shape [batch=2, n_neg_p_1=4].
    n_objects, embedding_dim, n_anchors = 32, 32, 8

    key = jax.random.PRNGKey(0)
    k_emb, k_anc, k_idx = jax.random.split(key, 3)

    emb_table = jax.random.normal(k_emb, (n_objects, embedding_dim), jnp.float32)
    anchors = jax.random.normal(k_anc, (n_anchors, embedding_dim), jnp.float32)
    o_idxs = jax.random.randint(k_idx, (2, 4), 0, n_objects, dtype=jnp.int32)

    o_vect, exc, inc = abcf_forward(o_idxs, emb_table, anchors)
    jax.block_until_ready((o_vect, exc, inc))

    # Sanity-check against a pure-JAX reference. With the Newton-refined
    # reciprocal the kernel matches to ~1e-5; tolerances left with margin.
    ref_vect, ref_exc, ref_inc = _reference(o_idxs, emb_table, anchors)
    assert o_vect.shape == (2, 4, embedding_dim)
    assert jnp.allclose(o_vect, ref_vect, atol=1e-3, rtol=1e-3)
    assert jnp.allclose(exc, ref_exc, atol=1e-3, rtol=1e-3)
    assert jnp.allclose(inc, ref_inc, atol=1e-3, rtol=1e-3)

    print("KERNEL_OK")
</pallas_src>

<mosaic_0001>
module attributes {stable_mosaic.version = 11 : i64} {
  func.func @_abcf_kernel(%arg0: i32, %arg1: memref<8xi32, #tpu.memory_space<smem>>, %arg2: memref<32x128xf32, #tpu.memory_space<any>>, %arg3: memref<128x128xf32, #tpu.memory_space<vmem>>, %arg4: memref<8x128xf32, #tpu.memory_space<vmem>>, %arg5: memref<8x128xf32, #tpu.memory_space<vmem>>, %arg6: memref<8x128xf32, #tpu.memory_space<vmem>>, %arg7: memref<8x128xf32, #tpu.memory_space<vmem>>, %arg8: memref<1x!tpu.dma_semaphore, #tpu.memory_space<semaphore_mem>>) attributes {dimension_semantics = [#tpu.dimension_semantics<parallel>], iteration_bounds = array<i64: 1>, scalar_prefetch = 1 : i64, scratch_operands = 2 : i64, tpu.core_type = #tpu.core_type<tc>, window_params = [{}, {pipeline_mode = #tpu.pipeline_mode<synchronous>, transform_indices = @transform_1, window_bounds = array<i64: 128, 128>}, {transform_indices = @transform_2, window_bounds = array<i64: 8, 128>}, {transform_indices = @transform_3, window_bounds = array<i64: 8, 128>}, {transform_indices = @transform_4, window_bounds = array<i64: 8, 128>}]} {
    %c8_i32 = arith.constant 8 : i32
    %0 = arith.muli %arg0, %c8_i32 : i32
    %c0_i32 = arith.constant 0 : i32
    %c8_i32_0 = arith.constant 8 : i32
    %1 = arith.addi %c0_i32, %c8_i32_0 : i32
    %c1_i32 = arith.constant 1 : i32
    scf.for %arg9 = %c0_i32 to %1 step %c1_i32  : i32 {
      %c1_i32_26 = arith.constant 1 : i32
      %50 = arith.muli %arg9, %c1_i32_26 : i32
      %c0_i32_27 = arith.constant 0 : i32
      %51 = arith.addi %c0_i32_27, %50 : i32
      %52 = arith.addi %0, %51 : i32
      %53 = arith.index_cast %52 : i32 to index
      %54 = memref.load %arg1[%53] : memref<8xi32, #tpu.memory_space<smem>>
      %c0_i32_28 = arith.constant 0 : i32
      %c0_i32_29 = arith.constant 0 : i32
      %55 = tpu.memref_slice %arg2[%54, %c0_i32_29] : memref<32x128xf32, #tpu.memory_space<any>> -> memref<1x128xf32, #tpu.memory_space<any>>
      %56 = tpu.memref_squeeze %55 : memref<1x128xf32, #tpu.memory_space<any>> -> memref<128xf32, #tpu.memory_space<any>>
      %c0_i32_30 = arith.constant 0 : i32
      %57 = tpu.memref_slice %arg7[%51, %c0_i32_30] : memref<8x128xf32, #tpu.memory_space<vmem>> -> memref<1x128xf32, #tpu.memory_space<vmem>>
      %58 = tpu.memref_squeeze %57 : memref<1x128xf32, #tpu.memory_space<vmem>> -> memref<128xf32, #tpu.memory_space<vmem>>
      %59 = tpu.memref_slice %arg8[%c0_i32_28] : memref<1x!tpu.dma_semaphore, #tpu.memory_space<semaphore_mem>> -> memref<1x!tpu.dma_semaphore, #tpu.memory_space<semaphore_mem>>
      %60 = tpu.memref_squeeze %59 : memref<1x!tpu.dma_semaphore, #tpu.memory_space<semaphore_mem>> -> memref<!tpu.dma_semaphore, #tpu.memory_space<semaphore_mem>>
      tpu.enqueue_dma source(%56 : memref<128xf32, #tpu.memory_space<any>>) target(%58 : memref<128xf32, #tpu.memory_space<vmem>>) target_semaphore(%60 : memref<!tpu.dma_semaphore, #tpu.memory_space<semaphore_mem>>)
    }
    %c8_i32_1 = arith.constant 8 : i32
    %c0_i32_2 = arith.constant 0 : i32
    %c8_i32_3 = arith.constant 8 : i32
    %2 = arith.addi %c0_i32_2, %c8_i32_3 : i32
    %c1_i32_4 = arith.constant 1 : i32
    scf.for %arg9 = %c0_i32_2 to %2 step %c1_i32_4  : i32 {
      %c0_i32_26 = arith.constant 0 : i32
      %c0_i32_27 = arith.constant 0 : i32
      %c0_i32_28 = arith.constant 0 : i32
      %c0_i32_29 = arith.constant 0 : i32
      %50 = tpu.memref_slice %arg2[%c0_i32_26, %c0_i32_29] : memref<32x128xf32, #tpu.memory_space<any>> -> memref<1x128xf32, #tpu.memory_space<any>>
      %51 = tpu.memref_squeeze %50 : memref<1x128xf32, #tpu.memory_space<any>> -> memref<128xf32, #tpu.memory_space<any>>
      %c0_i32_30 = arith.constant 0 : i32
      %52 = tpu.memref_slice %arg7[%c0_i32_27, %c0_i32_30] : memref<8x128xf32, #tpu.memory_space<vmem>> -> memref<1x128xf32, #tpu.memory_space<vmem>>
      %53 = tpu.memref_squeeze %52 : memref<1x128xf32, #tpu.memory_space<vmem>> -> memref<128xf32, #tpu.memory_space<vmem>>
      %54 = tpu.memref_slice %arg8[%c0_i32_28] : memref<1x!tpu.dma_semaphore, #tpu.memory_space<semaphore_mem>> -> memref<1x!tpu.dma_semaphore, #tpu.memory_space<semaphore_mem>>
      %55 = tpu.memref_squeeze %54 : memref<1x!tpu.dma_semaphore, #tpu.memory_space<semaphore_mem>> -> memref<!tpu.dma_semaphore, #tpu.memory_space<semaphore_mem>>
      tpu.wait_dma2 semaphore(%55 : memref<!tpu.dma_semaphore, #tpu.memory_space<semaphore_mem>>) src(%51 : memref<128xf32, #tpu.memory_space<any>>) dst(%53 : memref<128xf32, #tpu.memory_space<vmem>>)
    }
    %c0 = arith.constant 0 : index
    %c0_5 = arith.constant 0 : index
    %3 = vector.load %arg7[%c0, %c0_5] : memref<8x128xf32, #tpu.memory_space<vmem>>, vector<8x128xf32>
    %c0_6 = arith.constant 0 : index
    %c0_7 = arith.constant 0 : index
    %4 = vector.load %arg3[%c0_6, %c0_7] : memref<128x128xf32, #tpu.memory_space<vmem>>, vector<128x128xf32>
    %cst = arith.constant dense<0.000000e+00> : vector<8x128xf32>
    %5 = tpu.matmul %3, %4, %cst {dimension_numbers = #tpu.dot_dimension_numbers<[1], [1], [0], [0], [0, 0, 1, 0], [], []>} : vector<8x128xf32>, vector<128x128xf32>, vector<8x128xf32> -> vector<8x128xf32>
    %6 = tpu.iota {dimensions = array<i32: 1>} : vector<8x128xi32>
    %c8_i32_8 = arith.constant 8 : i32
    %7 = vector.broadcast %c8_i32_8 : i32 to vector<8x128xi32>
    %8 = arith.cmpi slt, %6, %7 : vector<8x128xi32>
    %cst_9 = arith.constant -1.000000e+30 : f32
    %9 = vector.broadcast %cst_9 : f32 to vector<8x128xf32>
    %10 = arith.select %8, %5, %9 : vector<8x128xi1>, vector<8x128xf32>
    %cst_10 = arith.constant dense<0xFF800000> : vector<8xf32>
    %11 = vector.multi_reduction <maximumf>, %10, %cst_10 [1] : vector<8x128xf32> to vector<8xf32>
    %12 = vector.shape_cast %11 : vector<8xf32> to vector<8x1xf32>
    %13 = vector.broadcast %12 : vector<8x1xf32> to vector<8x128xf32>
    %14 = arith.subf %10, %13 : vector<8x128xf32>
    %15 = math.exp %14 : vector<8x128xf32>
    %cst_11 = arith.constant dense<0.000000e+00> : vector<8xf32>
    %16 = vector.multi_reduction <add>, %15, %cst_11 [1] : vector<8x128xf32> to vector<8xf32>
    %17 = vector.shape_cast %16 : vector<8xf32> to vector<8x1xf32>
    %18 = tpu.reciprocal %17 {approx = true} : vector<8x1xf32> -> vector<8x1xf32>
    %19 = arith.mulf %17, %18 : vector<8x1xf32>
    %cst_12 = arith.constant 2.000000e+00 : f32
    %20 = vector.broadcast %cst_12 : f32 to vector<8x1xf32>
    %21 = arith.subf %20, %19 : vector<8x1xf32>
    %22 = arith.mulf %18, %21 : vector<8x1xf32>
    %23 = vector.broadcast %22 : vector<8x1xf32> to vector<8x128xf32>
    %24 = arith.mulf %15, %23 : vector<8x128xf32>
    %cst_13 = arith.constant dense<0.000000e+00> : vector<8x128xf32>
    %25 = tpu.matmul %24, %4, %cst_13 {dimension_numbers = #tpu.dot_dimension_numbers<[1], [0], [0], [1], [0, 0, 1, 1], [], []>} : vector<8x128xf32>, vector<128x128xf32>, vector<8x128xf32> -> vector<8x128xf32>
    %c0_14 = arith.constant 0 : index
    %c0_15 = arith.constant 0 : index
    %26 = vector.load %arg4[%c0_14, %c0_15] : memref<8x128xf32, #tpu.memory_space<vmem>>, vector<8x128xf32>
    tpu.vector_store %arg4[%c0_14, %c0_15], %25 {strides = array<i32>} : memref<8x128xf32, #tpu.memory_space<vmem>>, vector<8x128xf32>,
    %27 = math.log %17 : vector<8x1xf32>
    %28 = vector.broadcast %27 : vector<8x1xf32> to vector<8x128xf32>
    %29 = arith.subf %14, %28 : vector<8x128xf32>
    %30 = tpu.iota {dimensions = array<i32: 0>} : vector<8x1xi32>
    %31 = vector.broadcast %0 : i32 to vector<8x1xi32>
    %32 = arith.addi %30, %31 : vector<8x1xi32>
    %c8_i32_16 = arith.constant 8 : i32
    %33 = vector.broadcast %c8_i32_16 : i32 to vector<8x1xi32>
    %34 = arith.cmpi slt, %32, %33 : vector<8x1xi32>
    %35 = vector.broadcast %34 : vector<8x1xi1> to vector<8x128xi1>
    %36 = arith.andi %35, %8 : vector<8x128xi1>
    %37 = arith.mulf %24, %29 : vector<8x128xf32>
    %cst_17 = arith.constant 0.000000e+00 : f32
    %38 = vector.broadcast %cst_17 : f32 to vector<8x128xf32>
    %39 = arith.select %36, %37, %38 : vector<8x128xi1>, vector<8x128xf32>
    %cst_18 = arith.constant 0.000000e+00 : f32
    %40 = vector.broadcast %cst_18 : f32 to vector<8x128xf32>
    %41 = arith.select %36, %24, %40 : vector<8x128xi1>, vector<8x128xf32>
    %cst_19 = arith.constant dense<0.000000e+00> : vector<128xf32>
    %42 = vector.multi_reduction <add>, %39, %cst_19 [0] : vector<8x128xf32> to vector<128xf32>
    %43 = vector.shape_cast %42 : vector<128xf32> to vector<1x128xf32>
    %cst_20 = arith.constant 0.000000e+00 : f32
    %44 = vector.broadcast %cst_20 : f32 to vector<1x128xf32>
    %45 = arith.subf %44, %43 : vector<1x128xf32>
    %c0_21 = arith.constant 0 : index
    %c0_22 = arith.constant 0 : index
    %46 = vector.load %arg5[%c0_21, %c0_22] : memref<8x128xf32, #tpu.memory_space<vmem>>, vector<1x128xf32>
    tpu.vector_store %arg5[%c0_21, %c0_22], %45 {strides = array<i32>} : memref<8x128xf32, #tpu.memory_space<vmem>>, vector<1x128xf32>,
    %cst_23 = arith.constant dense<0.000000e+00> : vector<128xf32>
    %47 = vector.multi_reduction <add>, %41, %cst_23 [0] : vector<8x128xf32> to vector<128xf32>
    %48 = vector.shape_cast %47 : vector<128xf32> to vector<1x128xf32>
    %c0_24 = arith.constant 0 : index
    %c0_25 = arith.constant 0 : index
    %49 = vector.load %arg6[%c0_24, %c0_25] : memref<8x128xf32, #tpu.memory_space<vmem>>, vector<1x128xf32>
    tpu.vector_store %arg6[%c0_24, %c0_25], %48 {strides = array<i32>} : memref<8x128xf32, #tpu.memory_space<vmem>>, vector<1x128xf32>,
    return
  }
  func.func @transform_1(%arg0: i32, %arg1: memref<8xi32, #tpu.memory_space<smem>>) -> (i32, i32) {
    %c0_i32 = arith.constant 0 : i32
    %c0_i32_0 = arith.constant 0 : i32
    %c0_i32_1 = arith.constant 0 : i32
    return %c0_i32, %c0_i32_0 : i32, i32
  }
  func.func @transform_2(%arg0: i32, %arg1: memref<8xi32, #tpu.memory_space<smem>>) -> (i32, i32) {
    %c0_i32 = arith.constant 0 : i32
    %c0_i32_0 = arith.constant 0 : i32
    return %arg0, %c0_i32 : i32, i32
  }
  func.func @transform_3(%arg0: i32, %arg1: memref<8xi32, #tpu.memory_space<smem>>) -> (i32, i32) {
    %c0_i32 = arith.constant 0 : i32
    %c0_i32_0 = arith.constant 0 : i32
    return %arg0, %c0_i32 : i32, i32
  }
  func.func @transform_4(%arg0: i32, %arg1: memref<8xi32, #tpu.memory_space<smem>>) -> (i32, i32) {
    %c0_i32 = arith.constant 0 : i32
    %c0_i32_0 = arith.constant 0 : i32
    return %arg0, %c0_i32 : i32, i32
  }
}

</mosaic_0001>

<llo_original>
// kernel: tpu_custom_call.1
$region0: #{tpu_custom_call.1}
  #allocation0 [shape = 'u32[]', space=smem, size = 0x4, offset = 0x4, fixed_abs, tag = 'smem constant byte address 0x4 - core index']
  #allocation1 [shape = 'u32[144,128]{1,0:T(1,128)}', space=vmem, size = 0x12000, scoped, tag = 'internal scratch']
  #allocation2 [shape = 'f32[8,128]{1,0:T(8,128)}', space=vmem, size = 0x1000, scoped, tag = 'scratch operand']
  #allocation3 [shape = 's32[1]{0}', space=sflag, size = 0x4, scoped, tag = 'scratch operand']
  #allocation4 [shape = 's32[1]{0}', space=sflag, size = 0x4, scoped, tag = 'scoped memory for tpu_custom_call.1']
  #allocation5 [shape = 'u8[512]{0}', space=smem, size = 0x200, scoped, tag = 'prefetched SMEM operand 0']
  #allocation13 [shape = 's32[]', space=sflag, size = 0x4, offset = 0, fixed_abs, tag = 'sflag constant byte address 0x0 - dummy sync flag']
  #allocation14 [shape = 's32[]', space=sflag, size = 0x4, offset = 0, fixed_abs, tag = 'sflag constant byte address 0x0 - dummy sync flag']
  #allocation15 [shape = 'u32[]', space=smem, size = 0x4, offset = 0x44, fixed_abs, tag = 'smem constant byte address 0x44 - assertion arg 0']
  #allocation16 [shape = 'u32[]', space=smem, size = 0x4, offset = 0x48, fixed_abs, tag = 'smem constant byte address 0x48 - assertion arg 1']
  %s0 = inlined_call_operand.hbm [shape: s32[8], index: 0, kind: input, shape index: {}]
  %s1 = inlined_call_operand.hbm [shape: f32[32,128], index: 1, kind: input, shape index: {}]
  %s2 = inlined_call_operand.hbm [shape: f32[128,128], index: 2, kind: input, shape index: {}]
  %s3 = inlined_call_operand.hbm [shape: f32[8,128], index: 3, kind: output, shape index: {0}]
  %s4 = inlined_call_operand.hbm [shape: f32[8,128], index: 4, kind: output, shape index: {1}]
  %s5 = inlined_call_operand.hbm [shape: f32[8,128], index: 5, kind: output, shape index: {2}]
  %6 = xla_tuple %s3, %s4, %s5
  %s7 = sld [smem:[#allocation0]]
  $region52: #{tpu_custom_call.1} parent=0
    _
  %s9 = ssub.s32 1, %s7
  %s10 = scalar_select 0, %s9, %s7
  %12 = dma.hbm_to_smem %s0, 16, [#allocation5], [#allocation4]
  %13 = dma.done [#allocation4], 16
  %14 = sfence
  $region1: #{tpu_custom_call.1} parent=0
    #allocation6 [shape = 'u8[65536]{0}', space=vmem, size = 0x10000, scoped, tag = 'input window, operand 2, single buffered']
    #allocation7 [shape = 's32[1]{0}', space=sflag, size = 0x4, scoped, tag = 'scoped memory for tpu_custom_call.1']
    #allocation8 [shape = 's32[1]{0}', space=sflag, size = 0x4, scoped, tag = 'scoped memory for tpu_custom_call.1']
    #allocation9 [shape = 'u8[4096]{0}', space=vmem, size = 0x1000, scoped, tag = 'output window, operand 0, single buffered']
    #allocation10 [shape = 'u8[4096]{0}', space=vmem, size = 0x1000, scoped, tag = 'output window, operand 1, single buffered']
    #allocation11 [shape = 's32[1]{0}', space=sflag, size = 0x4, scoped, tag = 'scoped memory for tpu_custom_call.1']
    #allocation12 [shape = 'u8[4096]{0}', space=vmem, size = 0x1000, scoped, tag = 'output window, operand 2, single buffered']
    %15 = vsyncpa [#allocation7], 0
    %16 = vsyncpa [#allocation8], 0
    %17 = vsyncpa [#allocation11], 0
    // Predicated region
    $region2: #{tpu_custom_call.1} parent=1 // pred_check
      _
    $region3: #{tpu_custom_call.1} parent=1 // pred_check_branch
      %19 = sbr.rel (0) target = $region5
    $region4: #{tpu_custom_call.1} parent=1 // pred_region
      %s21 = ssub.s32 2048, 2048
      %22 = vsyncadd [#allocation7], %s21
      %s23 = sshll.u32 [#allocation6], 4
      %s24 = int_to_ptr.vmem [resolvable:$true] %s23
      %29 = dma.hbm_to_vmem [thread:$0]  %s2, 2048, %s24, [#allocation7], 128, 128, 8
    $region5: #{tpu_custom_call.1} parent=1 // pred_fallthru
      _
    // Predicated region
    $region6: #{tpu_custom_call.1} parent=1 // pred_check
      _
    $region7: #{tpu_custom_call.1} parent=1 // pred_check_branch
      %31 = sbr.rel (0) target = $region9
    $region8: #{tpu_custom_call.1} parent=1 // pred_region
      %32 = dma.done [#allocation7], 2048
    $region9: #{tpu_custom_call.1} parent=1 // pred_fallthru
      _
    %s33 = smul.u32 0, 8
    loop: start=0, step=1, limit=8
    $region10: #{tpu_custom_call.1} parent=1 // loop_pre_header
      _
    $region11: #{tpu_custom_call.1} parent=1 // loop_header
      %s35 = sphi 0, %s39
      %p36 = scmp.ge.s32.totalorder %s35, 8
    $region12: #{tpu_custom_call.1} parent=1 // loop_header_branch
      %38 = sbr.rel (%p36) target = $region16
    $region13: #{tpu_custom_call.1} parent=1 // loop_body
      %s40 = sadd.s32 %s33, %s35
      %s41 = sld [smem:[#allocation5 + %s40]]
      %s42 = smul.addr %s41, 16
      %s43 = scalar_lea.hbm %s1, %s42
      %s44 = scalar_lea.vmem [#allocation2], %s35
      // Predicated region
      $region17: #{tpu_custom_call.1} parent=13 // pred_check
        _
      $region18: #{tpu_custom_call.1} parent=13 // pred_check_branch
        %46 = sbr.rel target = $region20
      $region19: #{tpu_custom_call.1} parent=13 // pred_region
        %47 = sst [smem:[#allocation15]] [#allocation14]
        %48 = sst [smem:[#allocation16]] [#allocation13]
      $region20: #{tpu_custom_call.1} parent=13 // pred_fallthru
        _
      %50 = shalt.err (0)
      %s52 = sshll.u32 %s44, 4
      %s53 = int_to_ptr.vmem [resolvable:$true] %s52
      %55 = dma.hbm_to_vmem [thread:$0]  %s43, 16, %s53, [#allocation3]
    $region14: #{tpu_custom_call.1} parent=1 // loop_footer
      %s39 = sadd.s32 1, %s35
    $region15: #{tpu_custom_call.1} parent=1 // loop_footer_branch
      %34 = sbr.rel target = $region11
    $region16: #{tpu_custom_call.1} parent=1 // loop_exit
      _
    loop: start=0, step=1, limit=8
    $region21: #{tpu_custom_call.1} parent=1 // loop_pre_header
      _
    $region22: #{tpu_custom_call.1} parent=1 // loop_header
      %s57 = sphi 0, %s61
      %p58 = scmp.ge.s32.totalorder %s57, 8
    $region23: #{tpu_custom_call.1} parent=1 // loop_header_branch
      %60 = sbr.rel (%p58) target = $region27
    $region24: #{tpu_custom_call.1} parent=1 // loop_body
      %63 = dma.done [#allocation3], 16
    $region25: #{tpu_custom_call.1} parent=1 // loop_footer
      %s61 = sadd.s32 1, %s57
    $region26: #{tpu_custom_call.1} parent=1 // loop_footer_branch
      %56 = sbr.rel target = $region22
    $region27: #{tpu_custom_call.1} parent=1 // loop_exit
      _
    %v64 = vld [vmem:[#allocation2] sm:$0xff]
    %v65 = vld [vmem:[#allocation6] sm:$0xff]
    %v66 = vld [vmem:[#allocation6 + $0x8] sm:$0xff]
    %v67 = vld [vmem:[#allocation6 + $0x10] sm:$0xff]
    %v68 = vld [vmem:[#allocation6 + $0x18] sm:$0xff]
    %v69 = vld [vmem:[#allocation6 + $0x20] sm:$0xff]
    %v70 = vld [vmem:[#allocation6 + $0x28] sm:$0xff]
    %v71 = vld [vmem:[#allocation6 + $0x30] sm:$0xff]
    %v72 = vld [vmem:[#allocation6 + $0x38] sm:$0xff]
    %v73 = vld [vmem:[#allocation6 + $0x40] sm:$0xff]
    %v74 = vld [vmem:[#allocation6 + $0x48] sm:$0xff]
    %v75 = vld [vmem:[#allocation6 + $0x50] sm:$0xff]
    %v76 = vld [vmem:[#allocation6 + $0x58] sm:$0xff]
    %v77 = vld [vmem:[#allocation6 + $0x60] sm:$0xff]
    %v78 = vld [vmem:[#allocation6 + $0x68] sm:$0xff]
    %v79 = vld [vmem:[#allocation6 + $0x70] sm:$0xff]
    %v80 = vld [vmem:[#allocation6 + $0x78] sm:$0xff]
    %81 = vmatprep.subr.mxu0 0.0
    %82 = vmatpush1.xpose.msra.mxu0 %v80
    %83 = vmatprep.subr.mxu0 0.0
    %84 = vmatpush1.xpose.msra.mxu0 %v79
    %85 = vmatprep.subr.mxu0 0.0
    %86 = vmatpush1.xpose.msra.mxu0 %v78
    %87 = vmatprep.subr.mxu0 0.0
    %88 = vmatpush1.xpose.msra.mxu0 %v77
    %89 = vmatprep.subr.mxu0 0.0
    %90 = vmatpush1.xpose.msra.mxu0 %v76
    %91 = vmatprep.subr.mxu0 0.0
    %92 = vmatpush1.xpose.msra.mxu0 %v75
    %93 = vmatprep.subr.mxu0 0.0
    %94 = vmatpush1.xpose.msra.mxu0 %v74
    %95 = vmatprep.subr.mxu0 0.0
    %96 = vmatpush1.xpose.msra.mxu0 %v73
    %97 = vmatprep.subr.mxu0 0.0
    %98 = vmatpush1.xpose.msra.mxu0 %v72
    %99 = vmatprep.subr.mxu0 0.0
    %100 = vmatpush1.xpose.msra.mxu0 %v71
    %101 = vmatprep.subr.mxu0 0.0
    %102 = vmatpush1.xpose.msra.mxu0 %v70
    %103 = vmatprep.subr.mxu0 0.0
    %104 = vmatpush1.xpose.msra.mxu0 %v69
    %105 = vmatprep.subr.mxu0 0.0
    %106 = vmatpush1.xpose.msra.mxu0 %v68
    %107 = vmatprep.subr.mxu0 0.0
    %108 = vmatpush1.xpose.msra.mxu0 %v67
    %109 = vmatprep.subr.mxu0 0.0
    %110 = vmatpush1.xpose.msra.mxu0 %v66
    %111 = vmatprep.subr.mxu0 0.0
    %112 = vmatpush1.xpose.msra.mxu0 %v65
    %113 = vmatprep.subr.mxu0 0.0
    %114 = vmatpush2.xpose.msra.mxu0 0.0
    %115 = vmatprep.subr.mxu0 0.0
    %116 = vmatpush2.xpose.msra.mxu0 0.0
    %117 = vmatprep.subr.mxu0 0.0
    %118 = vmatpush2.xpose.msra.mxu0 0.0
    %119 = vmatprep.subr.mxu0 0.0
    %120 = vmatpush2.xpose.msra.mxu0 0.0
    %121 = vmatprep.subr.mxu0 0.0
    %122 = vmatpush2.xpose.msra.mxu0 0.0
    %123 = vmatprep.subr.mxu0 0.0
    %124 = vmatpush2.xpose.msra.mxu0 0.0
    %125 = vmatprep.subr.mxu0 0.0
    %126 = vmatpush2.xpose.msra.mxu0 0.0
    %127 = vmatprep.subr.mxu0 0.0
    %128 = vmatpush2.xpose.msra.mxu0 0.0
    %129 = vmatprep.subr.mxu0 0.0
    %130 = vmatpush2.xpose.msra.mxu0 0.0
    %131 = vmatprep.subr.mxu0 0.0
    %132 = vmatpush2.xpose.msra.mxu0 0.0
    %133 = vmatprep.subr.mxu0 0.0
    %134 = vmatpush2.xpose.msra.mxu0 0.0
    %135 = vmatprep.subr.mxu0 0.0
    %136 = vmatpush2.xpose.msra.mxu0 0.0
    %137 = vmatprep.subr.mxu0 0.0
    %138 = vmatpush2.xpose.msra.mxu0 0.0
    %139 = vmatprep.subr.mxu0 0.0
    %140 = vmatpush2.xpose.msra.mxu0 0.0
    %141 = vmatprep.subr.mxu0 0.0
    %142 = vmatpush2.xpose.msra.mxu0 0.0
    %143 = vmatprep.subr.mxu0 0.0
    %144 = vmatpush2.xpose.msra.mxu0 0.0
    %145 = vmatprep.mubr.f32.mxu0 0.0
    %146 = vmatmul.mubr.f32.gmra.mxu0 %v64
    %v147 = vpop.f32.mrf.mxu0
    %v148 = vadd.f32 0.0, %v147
    %v149 = vpop.f32.mrf.mxu0
    %150 = vdwg.mxu0
    %v151 = vlaneseq
    %v152 = vand.u32 %v151, 127
    %vm153 = vcmp.lt.s32.totalorder %v152, 8
    %v154 = vsel %vm153, %v148, -1e+30
    %155 = vmax.xlane.f32.xlu0 %v154
    %v156 = vpop.xlane.xlu0 %155
    %v157 = vsub.f32 %v154, %v156
    %v158 = vmul.f32 %v157, 1.442695
    %v159 = vpow.pop %v158
    %160 = vadd.xlane.f32.xlu0 %v159
    %v161 = vpop.xlane.xlu0 %160
    %v162 = vrcp.pop %v161
    %v163 = vmul.f32 %v161, %v162
    %v164 = vsub.f32 2.0, %v163
    %v165 = vmul.f32 %v162, %v164
    %v166 = vmul.f32 %v159, %v165
    %167 = vmatprep.subr.mxu0 0.0
    %168 = vmatpush1.msra.mxu0 %v80
    %169 = vmatprep.subr.mxu0 0.0
    %170 = vmatpush1.msra.mxu0 %v79
    %171 = vmatprep.subr.mxu0 0.0
    %172 = vmatpush1.msra.mxu0 %v78
    %173 = vmatprep.subr.mxu0 0.0
    %174 = vmatpush1.msra.mxu0 %v77
    %175 = vmatprep.subr.mxu0 0.0
    %176 = vmatpush1.msra.mxu0 %v76
    %177 = vmatprep.subr.mxu0 0.0
    %178 = vmatpush1.msra.mxu0 %v75
    %179 = vmatprep.subr.mxu0 0.0
    %180 = vmatpush1.msra.mxu0 %v74
    %181 = vmatprep.subr.mxu0 0.0
    %182 = vmatpush1.msra.mxu0 %v73
    %183 = vmatprep.subr.mxu0 0.0
    %184 = vmatpush1.msra.mxu0 %v72
    %185 = vmatprep.subr.mxu0 0.0
    %186 = vmatpush1.msra.mxu0 %v71
    %187 = vmatprep.subr.mxu0 0.0
    %188 = vmatpush1.msra.mxu0 %v70
    %189 = vmatprep.subr.mxu0 0.0
    %190 = vmatpush1.msra.mxu0 %v69
    %191 = vmatprep.subr.mxu0 0.0
    %192 = vmatpush1.msra.mxu0 %v68
    %193 = vmatprep.subr.mxu0 0.0
    %194 = vmatpush1.msra.mxu0 %v67
    %195 = vmatprep.subr.mxu0 0.0
    %196 = vmatpush1.msra.mxu0 %v66
    %197 = vmatprep.subr.mxu0 0.0
    %198 = vmatpush1.msra.mxu0 %v65
    %199 = vmatprep.subr.mxu0 0.0
    %200 = vmatpush2.msra.mxu0 0.0
    %201 = vmatprep.subr.mxu0 0.0
    %202 = vmatpush2.msra.mxu0 0.0
    %203 = vmatprep.subr.mxu0 0.0
    %204 = vmatpush2.msra.mxu0 0.0
    %205 = vmatprep.subr.mxu0 0.0
    %206 = vmatpush2.msra.mxu0 0.0
    %207 = vmatprep.subr.mxu0 0.0
    %208 = vmatpush2.msra.mxu0 0.0
    %209 = vmatprep.subr.mxu0 0.0
    %210 = vmatpush2.msra.mxu0 0.0
    %211 = vmatprep.subr.mxu0 0.0
    %212 = vmatpush2.msra.mxu0 0.0
    %213 = vmatprep.subr.mxu0 0.0
    %214 = vmatpush2.msra.mxu0 0.0
    %215 = vmatprep.subr.mxu0 0.0
    %216 = vmatpush2.msra.mxu0 0.0
    %217 = vmatprep.subr.mxu0 0.0
    %218 = vmatpush2.msra.mxu0 0.0
    %219 = vmatprep.subr.mxu0 0.0
    %220 = vmatpush2.msra.mxu0 0.0
    %221 = vmatprep.subr.mxu0 0.0
    %222 = vmatpush2.msra.mxu0 0.0
    %223 = vmatprep.subr.mxu0 0.0
    %224 = vmatpush2.msra.mxu0 0.0
    %225 = vmatprep.subr.mxu0 0.0
    %226 = vmatpush2.msra.mxu0 0.0
    %227 = vmatprep.subr.mxu0 0.0
    %228 = vmatpush2.msra.mxu0 0.0
    %229 = vmatprep.subr.mxu0 0.0
    %230 = vmatpush2.msra.mxu0 0.0
    %231 = vmatprep.mubr.f32.mxu0 0.0
    %232 = vmatmul.mubr.f32.gmra.mxu0 %v166
    %v233 = vpop.f32.mrf.mxu0
    %v234 = vadd.f32 0.0, %v233
    %v235 = vpop.f32.mrf.mxu0
    %236 = vdwg.mxu0
    %237 = vst [vmem:[#allocation9] sm:$0xff] %v234
    %v238 = vlog2.pop %v161
    %v239 = vmul.f32 %v238, 0.6931472
    %v240 = vsub.f32 %v157, %v239
    %v241 = vlaneseq
    %v242 = vshrl.u32 %v241, 7
    %v243 = vstv %s33
    %v244 = vadd.s32 %v242, %v243
    %vm245 = vcmp.lt.s32.totalorder %v244, 8
    %v246 = vsel %vm245, 1, 0
    %vm247 = vcmp.eq.s32.totalorder %v246, 1
    %vm248 = vmand %vm247, %vm153
    %v249 = vmul.f32 %v166, %v240
    %v250 = vsel %vm248, %v249, 0.0
    %v251 = vsel %vm248, %v166, 0.0
    %v252 = vrot.slane %v250, 4
    %v253 = vadd.f32 %v250, %v252
    %v254 = vrot.slane %v253, 2
    %v255 = vadd.f32 %v253, %v254
    %v256 = vrot.slane %v255, 1
    %v257 = vadd.f32 %v255, %v256
    %v258 = vsub.f32 0.0, %v257
    %259 = vst [vmem:[#allocation10] sm:$0x1] %v258
    %v260 = vrot.slane %v251, 4
    %v261 = vadd.f32 %v251, %v260
    %v262 = vrot.slane %v261, 2
    %v263 = vadd.f32 %v261, %v262
    %v264 = vrot.slane %v263, 1
    %v265 = vadd.f32 %v263, %v264
    %266 = vst [vmem:[#allocation12] sm:$0x1] %v265
    // Predicated region
    $region28: #{tpu_custom_call.1} parent=1 // pred_check
      _
    $region29: #{tpu_custom_call.1} parent=1 // pred_check_branch
      %268 = sbr.rel (0) target = $region31
    $region30: #{tpu_custom_call.1} parent=1 // pred_region
      %s270 = ssub.s32 128, 128
      %271 = vsyncadd [#allocation8], %s270
      %s273 = sshll.u32 [#allocation9], 4
      %s274 = int_to_ptr.vmem [resolvable:$true] %s273
      %276 = dma.vmem_to_hbm [thread:$0]  %s274, 128, %s3, [#allocation8]
    $region31: #{tpu_custom_call.1} parent=1 // pred_fallthru
      _
    // Predicated region
    $region32: #{tpu_custom_call.1} parent=1 // pred_check
      _
    $region33: #{tpu_custom_call.1} parent=1 // pred_check_branch
      %278 = sbr.rel (0) target = $region35
    $region34: #{tpu_custom_call.1} parent=1 // pred_region
      %s280 = ssub.s32 128, 128
      %281 = vsyncadd [#allocation11], %s280
      %s283 = sshll.u32 [#allocation10], 4
      %s284 = int_to_ptr.vmem [resolvable:$true] %s283
      %286 = dma.vmem_to_hbm [thread:$0]  %s284, 128, %s4, [#allocation11]
    $region35: #{tpu_custom_call.1} parent=1 // pred_fallthru
      _
    // Predicated region
    $region36: #{tpu_custom_call.1} parent=1 // pred_check
      _
    $region37: #{tpu_custom_call.1} parent=1 // pred_check_branch
      %288 = sbr.rel (0) target = $region39
    $region38: #{tpu_custom_call.1} parent=1 // pred_region
      %s290 = ssub.s32 128, 128
      %291 = vsyncadd [#allocation11], %s290
      %s293 = sshll.u32 [#allocation12], 4
      %s294 = int_to_ptr.vmem [resolvable:$true] %s293
      %296 = dma.vmem_to_hbm [thread:$0]  %s294, 128, %s5, [#allocation11]
    $region39: #{tpu_custom_call.1} parent=1 // pred_fallthru
      _
    // Predicated region
    $region40: #{tpu_custom_call.1} parent=1 // pred_check
      _
    $region41: #{tpu_custom_call.1} parent=1 // pred_check_branch
      %298 = sbr.rel (0) target = $region43
    $region42: #{tpu_custom_call.1} parent=1 // pred_region
      %299 = dma.done [#allocation8], 128
    $region43: #{tpu_custom_call.1} parent=1 // pred_fallthru
      _
    // Predicated region
    $region44: #{tpu_custom_call.1} parent=1 // pred_check
      _
    $region45: #{tpu_custom_call.1} parent=1 // pred_check_branch
      %301 = sbr.rel (0) target = $region47
    $region46: #{tpu_custom_call.1} parent=1 // pred_region
      %302 = dma.done [#allocation11], 128
    $region47: #{tpu_custom_call.1} parent=1 // pred_fallthru
      _
    // Predicated region
    $region48: #{tpu_custom_call.1} parent=1 // pred_check
      _
    $region49: #{tpu_custom_call.1} parent=1 // pred_check_branch
      %304 = sbr.rel (0) target = $region51
    $region50: #{tpu_custom_call.1} parent=1 // pred_region
      %305 = dma.done [#allocation11], 128
    $region51: #{tpu_custom_call.1} parent=1 // pred_fallthru
      _
    %306 = vsyncpa [#allocation7], 1
    %307 = vsyncpa [#allocation8], 1
    %308 = vsyncpa [#allocation11], 1
  %309 = vsyncmov [#allocation3]
  %s310 = vpop.sfrf %309
  %p311 = scmp.eq.s32.totalorder %s310, 0
  %p312 = pneg %p311
  %314 = shalt.err (%p312)

</llo_original>
